<compile_context>
chip_gen: v7x
topology: tpu7x:2x2x1
jax: 0.10.0
libtpu: 0.0.40
codegen_flags: <defaults>
</compile_context>

<pallas_src>
import jax
import jax.numpy as jnp
from jax.experimental import pallas as pl
from jax.experimental.pallas import tpu as pltpu


# ----------------------------- tiling helpers -----------------------------

def _aligned_divisors(total, align):
    """Divisors of `total` that are multiples of `align` (ascending)."""
    return [d for d in range(align, total + 1, align) if total % d == 0]


def _choose_tiles(N, C, M, itemsize=4, target_bytes=2 * 1024 * 1024):
    """Pick (n_tile, c_tile, m_tile) dividing (N, C, M) such that the x block
    obeys the TPU (8, 128) layout rule on its last two dims and stays around
    `target_bytes`, so BlockSpec double-buffering pipelines on all chips."""
    # channel tile: sublane-aligned divisor of C, or all of C.
    if C % 8 == 0:
        cands = _aligned_divisors(C, 8)
        fits = [d for d in cands if d * M * itemsize <= target_bytes]
        c_tile = max(fits) if fits else min(cands)
    else:
        c_tile = C
    # spatial tile: lane-aligned divisor of M, or all of M.
    if c_tile * M * itemsize <= target_bytes or M % 128 != 0:
        m_tile = M
    else:
        cands = _aligned_divisors(M, 128)
        fits = [d for d in cands if c_tile * d * itemsize <= target_bytes]
        m_tile = max(fits) if fits else min(cands)
    # batch tile: fill the remaining budget (amortizes per-grid-step overhead
    # when the per-(channel, spatial) tile is small).
    fits = [d for d in _aligned_divisors(N, 1)
            if d * c_tile * m_tile * itemsize <= target_bytes]
    n_tile = max(fits) if fits else 1
    return n_tile, c_tile, m_tile


# -------------------------------- kernels ---------------------------------

def _stats_kernel(x_ref, stats_ref):
    """Accumulate per-channel sums over the batch/spatial reduction axes.

    x_ref:     (n_tile, c_tile, m_tile) f32; real on even lanes, imag on odd
               (m_tile is a multiple of 128 or the full M, so lane parity is
               preserved across spatial tiles).
    stats_ref: (c_tile, 4) f32 resident accumulator:
               [sum_r, sum_i, sumsq_r, sumsq_i]
    """
    ni = pl.program_id(1)
    mi = pl.program_id(2)

    @pl.when((ni == 0) & (mi == 0))
    def _():
        stats_ref[...] = jnp.zeros_like(stats_ref)

    x = x_ref[...]                                           # (nt, ct, mt)
    lane = jax.lax.broadcasted_iota(jnp.int32, x.shape, 2)
    is_real = (lane & 1) == 0
    xr = jnp.where(is_real, x, 0.0)                          # real lanes
    xi = x - xr                                              # imag lanes

    s_r = jnp.sum(xr, axis=-1, keepdims=True)                # (nt, ct, 1)
    s_i = jnp.sum(xi, axis=-1, keepdims=True)
    q_r = jnp.sum(xr * xr, axis=-1, keepdims=True)
    q_i = jnp.sum(xi * xi, axis=-1, keepdims=True)

    def col(v):                                              # -> (ct, 1)
        return jnp.sum(v, axis=0)

    partial = jnp.concatenate(
        [col(s_r), col(s_i), col(q_r), col(q_i)], axis=-1)   # (ct, 4)
    stats_ref[...] += partial


def _apply_kernel(x_ref, scale_ref, shift_ref, o_ref):
    """o = x * scale + shift with per-part (even/odd lane) scale & shift.

    x_ref/o_ref:         (n_tile, c_tile, m_tile) f32
    scale_ref/shift_ref: (c_tile, 2) f32, column 0 = real part, 1 = imag part
    """
    x = x_ref[...]                                           # (nt, ct, mt)
    c_tile, m_tile = x.shape[1], x.shape[2]
    lane = jax.lax.broadcasted_iota(jnp.int32, (c_tile, m_tile), 1)
    is_real = (lane & 1) == 0
    # Build the per-channel scale/shift lane maps once per block, then
    # broadcast over the batch-tile dim (saves VALU work when n_tile > 1).
    sc = jnp.where(is_real, scale_ref[:, 0:1], scale_ref[:, 1:2])  # (ct, mt)
    sh = jnp.where(is_real, shift_ref[:, 0:1], shift_ref[:, 1:2])
    o_ref[...] = x * sc[None, :, :] + sh[None, :, :]


# -------------------------------- wrapper ----------------------------------

def naive_complex_batchnorm2d(x, gamma_r, beta_r, gamma_i, beta_i, eps=1e-5):
    """x: (N, C, H, W, 2) float32. Returns same shape/dtype.

    Training-mode forward (batch statistics, biased variance), matching
    nn.BatchNorm2d applied to the real and imaginary slices independently.
    """
    assert x.ndim == 5 and x.shape[-1] == 2
    N, C, H, W, _ = x.shape
    M = H * W * 2                  # interleaved spatial axis (lane-dense)
    L = N * H * W                  # reduction count per channel per part

    x_slab = x.reshape(N, C, M)    # free: matches native contiguous layout
    n_tile, c_tile, m_tile = _choose_tiles(N, C, M)
    grid = (C // c_tile, N // n_tile, M // m_tile)

    # ---- pass 1: per-channel sum / sum-of-squares for real & imag parts ----
    stats = pl.pallas_call(
        _stats_kernel,
        out_shape=jax.ShapeDtypeStruct((C, 4), jnp.float32),
        grid=grid,
        in_specs=[pl.BlockSpec((n_tile, c_tile, m_tile),
                               lambda ci, ni, mi: (ni, ci, mi))],
        out_specs=pl.BlockSpec((c_tile, 4), lambda ci, ni, mi: (ci, 0)),
        compiler_params=pltpu.CompilerParams(
            dimension_semantics=("parallel", "arbitrary", "arbitrary")),
    )(x_slab)

    # ---- tiny (C, 2) math in plain JAX: scale = gamma*rsqrt(var+eps),
    #      shift = beta - mean*scale (biased variance, E[x^2]-E[x]^2) ----
    inv_L = jnp.float32(1.0 / L)
    mean = stats[:, 0:2] * inv_L                     # (C, 2) [real, imag]
    ex2 = stats[:, 2:4] * inv_L
    var = jnp.maximum(ex2 - mean * mean, 0.0)
    gamma = jnp.stack([gamma_r, gamma_i], axis=-1)   # (C, 2)
    beta = jnp.stack([beta_r, beta_i], axis=-1)      # (C, 2)
    scale = gamma * jax.lax.rsqrt(var + eps)
    shift = beta - mean * scale

    # ---- pass 2: elementwise normalize + affine (fully parallel grid) ----
    out_slab = pl.pallas_call(
        _apply_kernel,
        out_shape=jax.ShapeDtypeStruct((N, C, M), x.dtype),
        grid=grid,
        in_specs=[
            pl.BlockSpec((n_tile, c_tile, m_tile),
                         lambda ci, ni, mi: (ni, ci, mi)),
            pl.BlockSpec((c_tile, 2), lambda ci, ni, mi: (ci, 0)),
            pl.BlockSpec((c_tile, 2), lambda ci, ni, mi: (ci, 0)),
        ],
        out_specs=pl.BlockSpec((n_tile, c_tile, m_tile),
                               lambda ci, ni, mi: (ni, ci, mi)),
        compiler_params=pltpu.CompilerParams(
            dimension_semantics=("parallel", "parallel", "parallel")),
    )(x_slab, scale, shift)

    return out_slab.reshape(N, C, H, W, 2)


# ------------------------------- reference ---------------------------------

def _reference(x, gamma_r, beta_r, gamma_i, beta_i, eps=1e-5):
    def bn(part, g, b):
        mean = jnp.mean(part, axis=(0, 2, 3), keepdims=True)
        var = jnp.mean((part - mean) ** 2, axis=(0, 2, 3), keepdims=True)
        xh = (part - mean) * jax.lax.rsqrt(var + eps)
        return xh * g[None, :, None, None] + b[None, :, None, None]

    re = bn(x[..., 0], gamma_r, beta_r)
    im = bn(x[..., 1], gamma_i, beta_i)
    return jnp.stack([re, im], axis=-1)


if __name__ == "__main__":
    N, C, H, W = 2, 4, 16, 16
    key = jax.random.PRNGKey(0)
    kx, kgr, kbr, kgi, kbi = jax.random.split(key, 5)

    x = jax.random.normal(kx, (N, C, H, W, 2), dtype=jnp.float32)
    # BatchNorm2d defaults are gamma=1, beta=0; perturb deterministically so
    # the affine path is exercised.
    gamma_r = 1.0 + 0.1 * jax.random.normal(kgr, (C,), dtype=jnp.float32)
    beta_r = 0.1 * jax.random.normal(kbr, (C,), dtype=jnp.float32)
    gamma_i = 1.0 + 0.1 * jax.random.normal(kgi, (C,), dtype=jnp.float32)
    beta_i = 0.1 * jax.random.normal(kbi, (C,), dtype=jnp.float32)

    out = naive_complex_batchnorm2d(x, gamma_r, beta_r, gamma_i, beta_i)
    out = jax.block_until_ready(out)

    ref = _reference(x, gamma_r, beta_r, gamma_i, beta_i)
    assert out.shape == (N, C, H, W, 2)
    assert jnp.allclose(out, ref, atol=3e-5, rtol=1e-5), "mismatch vs reference"
    print("KERNEL_OK")
</pallas_src>

<mosaic_0001>
module attributes {stable_mosaic.version = 11 : i64} {
  func.func @_stats_kernel(%arg0: i32, %arg1: i32, %arg2: i32, %arg3: memref<2x4x512xf32, #tpu.memory_space<vmem>>, %arg4: memref<4x4xf32, #tpu.memory_space<vmem>>) attributes {dimension_semantics = [#tpu.dimension_semantics<parallel>, #tpu.dimension_semantics<arbitrary>, #tpu.dimension_semantics<arbitrary>], iteration_bounds = array<i64: 1, 1, 1>, scalar_prefetch = 0 : i64, scratch_operands = 0 : i64, tpu.core_type = #tpu.core_type<tc>, window_params = [{transform_indices = @transform_0, window_bounds = array<i64: 2, 4, 512>}, {transform_indices = @transform_1, window_bounds = array<i64: 4, 4>}]} {
    %c0_i32 = arith.constant 0 : i32
    %0 = arith.cmpi eq, %arg1, %c0_i32 : i32
    %c0_i32_0 = arith.constant 0 : i32
    %1 = arith.cmpi eq, %arg2, %c0_i32_0 : i32
    %2 = arith.andi %0, %1 : i1
    %3 = arith.extui %2 : i1 to i32
    %c0_i32_1 = arith.constant 0 : i32
    %4 = arith.cmpi ne, %3, %c0_i32_1 : i32
    scf.if %4 {
      %cst_17 = arith.constant 0.000000e+00 : f32
      %32 = vector.broadcast %cst_17 : f32 to vector<4x4xf32>
      %c0_18 = arith.constant 0 : index
      %c0_19 = arith.constant 0 : index
      %33 = vector.load %arg4[%c0_18, %c0_19] : memref<4x4xf32, #tpu.memory_space<vmem>>, vector<4x4xf32>
      tpu.vector_store %arg4[%c0_18, %c0_19], %32 {strides = array<i32>} : memref<4x4xf32, #tpu.memory_space<vmem>>, vector<4x4xf32>,
    } else {
    }
    %c0 = arith.constant 0 : index
    %c0_2 = arith.constant 0 : index
    %c0_3 = arith.constant 0 : index
    %5 = vector.load %arg3[%c0, %c0_2, %c0_3] : memref<2x4x512xf32, #tpu.memory_space<vmem>>, vector<2x4x512xf32>
    %6 = tpu.iota {dimensions = array<i32: 2>} : vector<2x4x512xi32>
    %c1_i32 = arith.constant 1 : i32
    %7 = vector.broadcast %c1_i32 : i32 to vector<2x4x512xi32>
    %8 = arith.andi %6, %7 : vector<2x4x512xi32>
    %c0_i32_4 = arith.constant 0 : i32
    %9 = vector.broadcast %c0_i32_4 : i32 to vector<2x4x512xi32>
    %10 = arith.cmpi eq, %8, %9 : vector<2x4x512xi32>
    %cst = arith.constant 0.000000e+00 : f32
    %11 = vector.broadcast %cst : f32 to vector<2x4x512xf32>
    %12 = arith.select %10, %5, %11 : vector<2x4x512xi1>, vector<2x4x512xf32>
    %13 = arith.subf %5, %12 : vector<2x4x512xf32>
    %cst_5 = arith.constant dense<0.000000e+00> : vector<2x4xf32>
    %14 = vector.multi_reduction <add>, %12, %cst_5 [2] : vector<2x4x512xf32> to vector<2x4xf32>
    %15 = vector.shape_cast %14 : vector<2x4xf32> to vector<2x4x1xf32>
    %cst_6 = arith.constant dense<0.000000e+00> : vector<2x4xf32>
    %16 = vector.multi_reduction <add>, %13, %cst_6 [2] : vector<2x4x512xf32> to vector<2x4xf32>
    %17 = vector.shape_cast %16 : vector<2x4xf32> to vector<2x4x1xf32>
    %18 = arith.mulf %12, %12 : vector<2x4x512xf32>
    %cst_7 = arith.constant dense<0.000000e+00> : vector<2x4xf32>
    %19 = vector.multi_reduction <add>, %18, %cst_7 [2] : vector<2x4x512xf32> to vector<2x4xf32>
    %20 = vector.shape_cast %19 : vector<2x4xf32> to vector<2x4x1xf32>
    %21 = arith.mulf %13, %13 : vector<2x4x512xf32>
    %cst_8 = arith.constant dense<0.000000e+00> : vector<2x4xf32>
    %22 = vector.multi_reduction <add>, %21, %cst_8 [2] : vector<2x4x512xf32> to vector<2x4xf32>
    %23 = vector.shape_cast %22 : vector<2x4xf32> to vector<2x4x1xf32>
    %cst_9 = arith.constant dense<0.000000e+00> : vector<4x1xf32>
    %24 = vector.multi_reduction <add>, %15, %cst_9 [0] : vector<2x4x1xf32> to vector<4x1xf32>
    %cst_10 = arith.constant dense<0.000000e+00> : vector<4x1xf32>
    %25 = vector.multi_reduction <add>, %17, %cst_10 [0] : vector<2x4x1xf32> to vector<4x1xf32>
    %cst_11 = arith.constant dense<0.000000e+00> : vector<4x1xf32>
    %26 = vector.multi_reduction <add>, %20, %cst_11 [0] : vector<2x4x1xf32> to vector<4x1xf32>
    %cst_12 = arith.constant dense<0.000000e+00> : vector<4x1xf32>
    %27 = vector.multi_reduction <add>, %23, %cst_12 [0] : vector<2x4x1xf32> to vector<4x1xf32>
    %28 = tpu.concatenate %24, %25, %26, %27 in 1 : vector<4x1xf32>, vector<4x1xf32>, vector<4x1xf32>, vector<4x1xf32> -> vector<4x4xf32>
    %c0_13 = arith.constant 0 : index
    %c0_14 = arith.constant 0 : index
    %29 = vector.load %arg4[%c0_13, %c0_14] : memref<4x4xf32, #tpu.memory_space<vmem>>, vector<4x4xf32>
    %30 = arith.addf %29, %28 : vector<4x4xf32>
    %c0_15 = arith.constant 0 : index
    %c0_16 = arith.constant 0 : index
    %31 = vector.load %arg4[%c0_15, %c0_16] : memref<4x4xf32, #tpu.memory_space<vmem>>, vector<4x4xf32>
    tpu.vector_store %arg4[%c0_15, %c0_16], %30 {strides = array<i32>} : memref<4x4xf32, #tpu.memory_space<vmem>>, vector<4x4xf32>,
    return
  }
  func.func @transform_0(%arg0: i32, %arg1: i32, %arg2: i32) -> (i32, i32, i32) {
    %c0_i32 = arith.constant 0 : i32
    return %arg1, %arg0, %arg2 : i32, i32, i32
  }
  func.func @transform_1(%arg0: i32, %arg1: i32, %arg2: i32) -> (i32, i32) {
    %c0_i32 = arith.constant 0 : i32
    %c0_i32_0 = arith.constant 0 : i32
    return %arg0, %c0_i32 : i32, i32
  }
}

</mosaic_0001>

<llo_original>
// kernel: tpu_custom_call.1
$region0: #{tpu_custom_call.1}
  #allocation0 [shape = 'u32[]', space=smem, size = 0x4, offset = 0x4, fixed_abs, tag = 'smem constant byte address 0x4 - core index']
  #allocation1 [shape = 'u32[144,128]{1,0:T(1,128)}', space=vmem, size = 0x12000, scoped, tag = 'internal scratch']
  %s0 = inlined_call_operand.hbm [shape: f32[2,4,512], index: 0, kind: input, shape index: {}]
  %s1 = inlined_call_operand.hbm [shape: f32[4,4], index: 1, kind: output, shape index: {}]
  %s2 = sld [smem:[#allocation0]]
  $region22: #{tpu_custom_call.1} parent=0
    _
  %s4 = ssub.s32 1, %s2
  %s5 = scalar_select 0, %s4, %s2
  $region1: #{tpu_custom_call.1} parent=0
    #allocation2 [shape = 'u8[16384]{0}', space=vmem, size = 0x4000, scoped, tag = 'input window, operand 0, single buffered']
    #allocation3 [shape = 's32[1]{0}', space=sflag, size = 0x4, scoped, tag = 'scoped memory for tpu_custom_call.1']
    #allocation4 [shape = 's32[1]{0}', space=sflag, size = 0x4, scoped, tag = 'scoped memory for tpu_custom_call.1']
    #allocation5 [shape = 'u8[2048]{0}', space=vmem, size = 0x800, scoped, tag = 'output window, operand 0, single buffered']
    %6 = vsyncpa [#allocation3], 0
    %7 = vsyncpa [#allocation4], 0
    // Predicated region
    $region2: #{tpu_custom_call.1} parent=1 // pred_check
      _
    $region3: #{tpu_custom_call.1} parent=1 // pred_check_branch
      %9 = sbr.rel (0) target = $region5
    $region4: #{tpu_custom_call.1} parent=1 // pred_region
      %s11 = ssub.s32 512, 512
      %12 = vsyncadd [#allocation3], %s11
      %s13 = sshll.u32 [#allocation2], 4
      %s14 = int_to_ptr.vmem [resolvable:$true] %s13
      %19 = dma.hbm_to_vmem [thread:$0]  %s0, 512, %s14, [#allocation3], 256, 256, 16
    $region5: #{tpu_custom_call.1} parent=1 // pred_fallthru
      _
    // Predicated region
    $region6: #{tpu_custom_call.1} parent=1 // pred_check
      _
    $region7: #{tpu_custom_call.1} parent=1 // pred_check_branch
      %21 = sbr.rel (0) target = $region9
    $region8: #{tpu_custom_call.1} parent=1 // pred_region
      %22 = dma.done [#allocation3], 512
    $region9: #{tpu_custom_call.1} parent=1 // pred_fallthru
      _
    %p23 = scmp.eq.s32.totalorder 0, 0
    %p24 = scmp.eq.s32.totalorder 0, 0
    %p25 = pnand %p23, %p24
    %p26 = pneg %p25
    // Predicated region
    $region10: #{tpu_custom_call.1} parent=1 // pred_check
      _
    $region11: #{tpu_custom_call.1} parent=1 // pred_check_branch
      %28 = sbr.rel (%p25) target = $region13
    $region12: #{tpu_custom_call.1} parent=1 // pred_region
      %vm29 = vcmask 27648
      %30 = vst.msk [vmem:[#allocation5] sm:$0xf] %vm29, 0.0
    $region13: #{tpu_custom_call.1} parent=1 // pred_fallthru
      _
    %v31 = vld [vmem:[#allocation2] sm:$0xff]
    %v32 = vld [vmem:[#allocation2 + $0x8] sm:$0xff]
    %v33 = vld [vmem:[#allocation2 + $0x10] sm:$0xff]
    %v34 = vld [vmem:[#allocation2 + $0x18] sm:$0xff]
    %v35 = vlaneseq
    %v36 = vand.u32 %v35, 127
    %v37 = vadd.s32 %v36, 128
    %v38 = vadd.s32 %v36, 256
    %v39 = vadd.s32 %v36, 384
    %v40 = vand.u32 %v36, 1
    %v41 = vand.u32 %v37, 1
    %v42 = vand.u32 %v38, 1
    %v43 = vand.u32 %v39, 1
    %vm44 = vcmp.eq.s32.totalorder %v40, 0
    %vm45 = vcmp.eq.s32.totalorder %v41, 0
    %vm46 = vcmp.eq.s32.totalorder %v42, 0
    %vm47 = vcmp.eq.s32.totalorder %v43, 0
    %v52 = vcombine.high %v31, %v31
    %v53 = vcombine.high %v32, %v32
    %v54 = vcombine.high %v33, %v33
    %v55 = vcombine.high %v34, %v34
    %v60 = vsel %vm44, %v31, 0.0
    %v61 = vsel %vm45, %v52, 0.0
    %v62 = vsel %vm46, %v32, 0.0
    %v63 = vsel %vm47, %v53, 0.0
    %v64 = vsel %vm44, %v33, 0.0
    %v65 = vsel %vm45, %v54, 0.0
    %v66 = vsel %vm46, %v34, 0.0
    %v67 = vsel %vm47, %v55, 0.0
    %v76 = vcombine.low %v60, %v61
    %v77 = vcombine.low %v62, %v63
    %v78 = vcombine.low %v64, %v65
    %v79 = vcombine.low %v66, %v67
    %v84 = vsub.f32 %v31, %v76
    %v85 = vsub.f32 %v32, %v77
    %v86 = vsub.f32 %v33, %v78
    %v87 = vsub.f32 %v34, %v79
    %vm88 = vcmask 1043456
    %v89 = vsel %vm88, %v60, 0.0
    %v90 = vsel %vm88, %v61, 0.0
    %v91 = vadd.f32 %v89, %v90
    %v92 = vsel %vm88, %v62, 0.0
    %v93 = vadd.f32 %v91, %v92
    %v94 = vsel %vm88, %v63, 0.0
    %v95 = vadd.f32 %v93, %v94
    %96 = vadd.xlane.f32.xlu0 %v95
    %v97 = vpop.xlane.xlu0 %96
    %v98 = vsel %vm88, %v64, 0.0
    %v99 = vsel %vm88, %v65, 0.0
    %v100 = vadd.f32 %v98, %v99
    %v101 = vsel %vm88, %v66, 0.0
    %v102 = vadd.f32 %v100, %v101
    %v103 = vsel %vm88, %v67, 0.0
    %v104 = vadd.f32 %v102, %v103
    %105 = vadd.xlane.f32.xlu0 %v104
    %v106 = vpop.xlane.xlu0 %105
    %v111 = vcombine.high %v84, %v84
    %v112 = vcombine.high %v85, %v85
    %v113 = vcombine.high %v86, %v86
    %v114 = vcombine.high %v87, %v87
    %v119 = vsel %vm88, %v84, 0.0
    %v120 = vsel %vm88, %v111, 0.0
    %v121 = vadd.f32 %v119, %v120
    %v122 = vsel %vm88, %v85, 0.0
    %v123 = vadd.f32 %v121, %v122
    %v124 = vsel %vm88, %v112, 0.0
    %v125 = vadd.f32 %v123, %v124
    %126 = vadd.xlane.f32.xlu0 %v125
    %v127 = vpop.xlane.xlu0 %126
    %v128 = vsel %vm88, %v86, 0.0
    %v129 = vsel %vm88, %v113, 0.0
    %v130 = vadd.f32 %v128, %v129
    %v131 = vsel %vm88, %v87, 0.0
    %v132 = vadd.f32 %v130, %v131
    %v133 = vsel %vm88, %v114, 0.0
    %v134 = vadd.f32 %v132, %v133
    %135 = vadd.xlane.f32.xlu0 %v134
    %v136 = vpop.xlane.xlu0 %135
    %v137 = vmul.f32 %v60, %v60
    %v138 = vmul.f32 %v61, %v61
    %v139 = vmul.f32 %v62, %v62
    %v140 = vmul.f32 %v63, %v63
    %v141 = vmul.f32 %v64, %v64
    %v142 = vmul.f32 %v65, %v65
    %v143 = vmul.f32 %v66, %v66
    %v144 = vmul.f32 %v67, %v67
    %v145 = vsel %vm88, %v137, 0.0
    %v146 = vsel %vm88, %v138, 0.0
    %v147 = vadd.f32 %v145, %v146
    %v148 = vsel %vm88, %v139, 0.0
    %v149 = vadd.f32 %v147, %v148
    %v150 = vsel %vm88, %v140, 0.0
    %v151 = vadd.f32 %v149, %v150
    %152 = vadd.xlane.f32.xlu0 %v151
    %v153 = vpop.xlane.xlu0 %152
    %v154 = vsel %vm88, %v141, 0.0
    %v155 = vsel %vm88, %v142, 0.0
    %v156 = vadd.f32 %v154, %v155
    %v157 = vsel %vm88, %v143, 0.0
    %v158 = vadd.f32 %v156, %v157
    %v159 = vsel %vm88, %v144, 0.0
    %v160 = vadd.f32 %v158, %v159
    %161 = vadd.xlane.f32.xlu0 %v160
    %v162 = vpop.xlane.xlu0 %161
    %v163 = vmul.f32 %v84, %v84
    %v164 = vmul.f32 %v85, %v85
    %v165 = vmul.f32 %v86, %v86
    %v166 = vmul.f32 %v87, %v87
    %v171 = vcombine.high %v163, %v163
    %v172 = vcombine.high %v164, %v164
    %v173 = vcombine.high %v165, %v165
    %v174 = vcombine.high %v166, %v166
    %v179 = vsel %vm88, %v163, 0.0
    %v180 = vsel %vm88, %v171, 0.0
    %v181 = vadd.f32 %v179, %v180
    %v182 = vsel %vm88, %v164, 0.0
    %v183 = vadd.f32 %v181, %v182
    %v184 = vsel %vm88, %v172, 0.0
    %v185 = vadd.f32 %v183, %v184
    %186 = vadd.xlane.f32.xlu0 %v185
    %v187 = vpop.xlane.xlu0 %186
    %v188 = vsel %vm88, %v165, 0.0
    %v189 = vsel %vm88, %v173, 0.0
    %v190 = vadd.f32 %v188, %v189
    %v191 = vsel %vm88, %v166, 0.0
    %v192 = vadd.f32 %v190, %v191
    %v193 = vsel %vm88, %v174, 0.0
    %v194 = vadd.f32 %v192, %v193
    %195 = vadd.xlane.f32.xlu0 %v194
    %v196 = vpop.xlane.xlu0 %195
    %v197 = vsel %vm88, %v97, 0.0
    %v198 = vsel %vm88, %v106, 0.0
    %v199 = vadd.f32 %v197, %v198
    %v200 = vsel %vm88, %v127, 0.0
    %v201 = vsel %vm88, %v136, 0.0
    %v202 = vadd.f32 %v200, %v201
    %v203 = vsel %vm88, %v153, 0.0
    %v204 = vsel %vm88, %v162, 0.0
    %v205 = vadd.f32 %v203, %v204
    %v206 = vsel %vm88, %v187, 0.0
    %v207 = vsel %vm88, %v196, 0.0
    %v208 = vadd.f32 %v206, %v207
    %vm209 = vcmask 7168
    %v210 = vsel %vm209, %v199, %v202
    %vm211 = vcmask 15360
    %v212 = vsel %vm211, %v210, %v205
    %vm213 = vcmask 23552
    %v214 = vsel %vm213, %v212, %v208
    %v215 = vld [vmem:[#allocation5] sm:$0xf]
    %v216 = vadd.f32 %v215, %v214
    %vm217 = vcmask 27648
    %218 = vst.msk [vmem:[#allocation5] sm:$0xf] %vm217, %v216
    // Predicated region
    $region14: #{tpu_custom_call.1} parent=1 // pred_check
      _
    $region15: #{tpu_custom_call.1} parent=1 // pred_check_branch
      %220 = sbr.rel (0) target = $region17
    $region16: #{tpu_custom_call.1} parent=1 // pred_region
      %s222 = ssub.s32 64, 64
      %223 = vsyncadd [#allocation4], %s222
      %s225 = sshll.u32 [#allocation5], 4
      %s226 = int_to_ptr.vmem [resolvable:$true] %s225
      %228 = dma.vmem_to_hbm [thread:$0]  %s226, 64, %s1, [#allocation4]
    $region17: #{tpu_custom_call.1} parent=1 // pred_fallthru
      _
    // Predicated region
    $region18: #{tpu_custom_call.1} parent=1 // pred_check
      _
    $region19: #{tpu_custom_call.1} parent=1 // pred_check_branch
      %230 = sbr.rel (0) target = $region21
    $region20: #{tpu_custom_call.1} parent=1 // pred_region
      %231 = dma.done [#allocation4], 64
    $region21: #{tpu_custom_call.1} parent=1 // pred_fallthru
      _
    %232 = vsyncpa [#allocation3], 1
    %233 = vsyncpa [#allocation4], 1

</llo_original>
